<compile_context>
chip_gen: v7x
topology: tpu7x:2x2x1
jax: 0.10.0
libtpu: 0.0.40
codegen_flags: <defaults>
</compile_context>

<pallas_src>
import jax
import jax.numpy as jnp
from jax.experimental import pallas as pl
from jax.experimental.pallas import tpu as pltpu


def textrnn_kernel(x_ref, wih_ref, whh_ref, b_ref, fcw_ref, fcb_ref, out_ref, gx_ref):
    """LSTM (last hidden) -> Linear -> Softmax(dim=1), packed-gate layout.

    x_ref   : (T*Bp, Ep)  time-major embedded inputs (bf16, zero padded)
    wih_ref : (Ep, 4*H)   input->hidden weights, gates packed along lanes (bf16)
    whh_ref : (H, 4*H)    hidden->hidden weights, gates packed along lanes (bf16)
    b_ref   : (1, 4*H)    combined bias b_ih + b_hh (f32)
    fcw_ref : (H, Op)     fc weights, classes zero padded to Op lanes (bf16)
    fcb_ref : (1, Op)     fc bias; padded class lanes hold -1e30 (softmax mask)
    out_ref : (Bp, Op)    softmax probabilities (real block at [:B, :O], f32)
    gx_ref  : (T*Bp,4*H)  VMEM scratch for the hoisted input projection (f32)
    """
    Bp = out_ref.shape[0]
    T = x_ref.shape[0] // Bp
    H = whh_ref.shape[0]

    # Hoisted input projection: one MXU call over all timesteps, bias folded
    # in once; staged in VMEM scratch to bound vreg pressure across the loop.
    gx_ref[...] = (
        jnp.dot(x_ref[...], wih_ref[...], preferred_element_type=jnp.float32)
        + b_ref[...]
    )

    whh = whh_ref[...]
    h = jnp.zeros((Bp, H), jnp.float32)
    c = jnp.zeros((Bp, H), jnp.float32)

    # T is static & tiny -> full unroll with constant slice offsets.
    for t in range(T):
        gates = gx_ref[pl.ds(t * Bp, Bp), :] + jnp.dot(
            h.astype(whh.dtype), whh, preferred_element_type=jnp.float32)
        # PyTorch nn.LSTM gate order along the packed lane axis: i | f | g | o.
        # One sigmoid + one tanh over the whole 128-lane gates tile; the
        # 32-lane gate sub-blocks are then extracted (lane shifts land on the
        # XLU slot, off the VPU/EUP critical path).  Gate math stays f32.
        sig = jax.nn.sigmoid(gates)
        tnh = jnp.tanh(gates)
        i = sig[:, 0 * H:1 * H]
        f = sig[:, 1 * H:2 * H]
        g = tnh[:, 2 * H:3 * H]
        o = sig[:, 3 * H:4 * H]
        c = f * c + i * g
        h = o * jnp.tanh(c)

    # FC + softmax over classes (padded class lanes have -1e30 bias -> exp==0).
    logits = (
        jnp.dot(h.astype(fcw_ref.dtype), fcw_ref[...],
                preferred_element_type=jnp.float32)
        + fcb_ref[...]
    )
    m = jnp.max(logits, axis=1, keepdims=True)
    e = jnp.exp(logits - m)
    # Exact divide so rows sum to 1 within tight tolerance.
    out_ref[...] = e / jnp.sum(e, axis=1, keepdims=True)


def init_params(key, vocab_size, embedding_dim, hidden_size, outputdim):
    ks = jax.random.split(key, 7)
    E, H, O = embedding_dim, hidden_size, outputdim
    scale = 0.1
    return {
        "embedding": scale * jax.random.normal(ks[0], (vocab_size, E), jnp.float32),
        "w_ih": scale * jax.random.normal(ks[1], (4 * H, E), jnp.float32),   # PyTorch layout
        "w_hh": scale * jax.random.normal(ks[2], (4 * H, H), jnp.float32),   # PyTorch layout
        "b_ih": scale * jax.random.normal(ks[3], (4 * H,), jnp.float32),
        "b_hh": scale * jax.random.normal(ks[4], (4 * H,), jnp.float32),
        "fc_w": scale * jax.random.normal(ks[5], (O, H), jnp.float32),       # PyTorch layout
        "fc_b": scale * jax.random.normal(ks[6], (O,), jnp.float32),
    }


def _round_up(x, m):
    return ((x + m - 1) // m) * m


def textrnn_forward(x_ids, params):
    B, T = x_ids.shape
    E = params["embedding"].shape[1]
    H = params["w_hh"].shape[1]
    O = params["fc_w"].shape[0]

    LANE, SUB = 128, 8
    Bp = _round_up(B, SUB)      # sublane granularity (f32)
    Ep = _round_up(E, SUB)      # contraction dim only needs sublane alignment
    Op = _round_up(O, LANE)     # lane-dense output store
    G = 4 * H                   # packed gate lanes (== 128 for H=32: one lane tile)

    # --- Embedding gather in plain JAX, then time-major, pad, flatten, bf16 ---
    emb = params["embedding"][x_ids].astype(jnp.float32)          # (B, T, E)
    emb = jnp.transpose(emb, (1, 0, 2))                           # (T, B, E)
    emb = jnp.pad(emb, ((0, 0), (0, Bp - B), (0, Ep - E)))        # (T, Bp, Ep)
    emb = emb.reshape(T * Bp, Ep).astype(jnp.bfloat16)            # (T*Bp, Ep)

    # --- Weights: x@W layout, gates packed along lanes, bf16 for MXU ---
    wih = jnp.pad(params["w_ih"].T, ((0, Ep - E), (0, 0))).astype(jnp.bfloat16)  # (Ep, 4H)
    whh = params["w_hh"].T.astype(jnp.bfloat16)                                   # (H, 4H)
    bias = (params["b_ih"] + params["b_hh"]).reshape(1, G).astype(jnp.float32)    # (1, 4H)

    fcw = jnp.pad(params["fc_w"].T, ((0, 0), (0, Op - O))).astype(jnp.bfloat16)   # (H, Op)
    # Padded class lanes get a huge negative bias -> exp == 0 -> exact softmax.
    fcb = jnp.pad(params["fc_b"], (0, Op - O),
                  constant_values=-1e30).reshape(1, Op).astype(jnp.float32)

    # TODO(synk): for v7x with large batches, add a batch-tile grid axis with
    # dimension_semantics=("parallel",) and constant weight index_maps so the
    # second TensorCore is used; at B=2 a single invocation is optimal.
    vmem = pl.BlockSpec(memory_space=pltpu.MemorySpace.VMEM)
    out_pad = pl.pallas_call(
        textrnn_kernel,
        out_shape=jax.ShapeDtypeStruct((Bp, Op), jnp.float32),
        in_specs=[vmem] * 6,
        out_specs=vmem,
        scratch_shapes=[pltpu.VMEM((T * Bp, G), jnp.float32)],
    )(emb, wih, whh, bias, fcw, fcb)
    return out_pad[:B, :O]


def textrnn_reference(x_ids, params):
    """Pure-JAX reference matching nn.Embedding + nn.LSTM + nn.Linear + Softmax."""
    emb = params["embedding"][x_ids].astype(jnp.float32)          # (B, T, E)
    B, T, _ = emb.shape
    H = params["w_hh"].shape[1]
    hi = jax.lax.Precision.HIGHEST
    b = params["b_ih"] + params["b_hh"]
    h = jnp.zeros((B, H), jnp.float32)
    c = jnp.zeros((B, H), jnp.float32)
    for t in range(T):
        x_t = emb[:, t, :]
        gates = (jnp.dot(x_t, params["w_ih"].T, precision=hi)
                 + jnp.dot(h, params["w_hh"].T, precision=hi) + b)
        i = jax.nn.sigmoid(gates[:, 0:H])
        f = jax.nn.sigmoid(gates[:, H:2 * H])
        g = jnp.tanh(gates[:, 2 * H:3 * H])
        o = jax.nn.sigmoid(gates[:, 3 * H:4 * H])
        c = f * c + i * g
        h = o * jnp.tanh(c)
    logits = jnp.dot(h, params["fc_w"].T, precision=hi) + params["fc_b"]
    return jax.nn.softmax(logits, axis=1)


if __name__ == "__main__":
    vocab_size, embedding_dim, hidden_size, outputdim = 50, 16, 32, 8
    batch, seq_len = 2, 8

    key = jax.random.PRNGKey(0)
    k_param, k_data = jax.random.split(key)
    params = init_params(k_param, vocab_size, embedding_dim, hidden_size, outputdim)
    x_ids = jax.random.randint(k_data, (batch, seq_len), 0, vocab_size, dtype=jnp.int32)

    out = jax.block_until_ready(textrnn_forward(x_ids, params))

    assert out.shape == (batch, outputdim)
    # rows of a softmax sum to 1 (exact divide kept in-kernel)
    assert bool(jnp.all(jnp.abs(jnp.sum(out, axis=1) - 1.0) < 1e-4))
    # packed-gate bf16/f32 kernel matches the unpadded HIGHEST-precision reference
    ref = textrnn_reference(x_ids, params)
    assert bool(jnp.allclose(out, ref, atol=1e-3, rtol=1e-3)), \
        f"max abs diff {float(jnp.max(jnp.abs(out - ref)))}"
    print("KERNEL_OK")
</pallas_src>

<mosaic_0001>
module attributes {stable_mosaic.version = 11 : i64} {
  func.func @textrnn_kernel(%arg0: memref<64x16xbf16, #tpu.memory_space<vmem>>, %arg1: memref<16x128xbf16, #tpu.memory_space<vmem>>, %arg2: memref<32x128xbf16, #tpu.memory_space<vmem>>, %arg3: memref<1x128xf32, #tpu.memory_space<vmem>>, %arg4: memref<32x128xbf16, #tpu.memory_space<vmem>>, %arg5: memref<1x128xf32, #tpu.memory_space<vmem>>, %arg6: memref<8x128xf32, #tpu.memory_space<vmem>>, %arg7: memref<64x128xf32, #tpu.memory_space<vmem>>) attributes {dimension_semantics = [], scalar_prefetch = 0 : i64, scratch_operands = 1 : i64, tpu.core_type = #tpu.core_type<tc>} {
    %c0 = arith.constant 0 : index
    %c0_0 = arith.constant 0 : index
    %0 = vector.load %arg0[%c0, %c0_0] : memref<64x16xbf16, #tpu.memory_space<vmem>>, vector<64x16xbf16>
    %c0_1 = arith.constant 0 : index
    %c0_2 = arith.constant 0 : index
    %1 = vector.load %arg1[%c0_1, %c0_2] : memref<16x128xbf16, #tpu.memory_space<vmem>>, vector<16x128xbf16>
    %cst = arith.constant dense<0.000000e+00> : vector<64x128xf32>
    %2 = tpu.matmul %0, %1, %cst {dimension_numbers = #tpu.dot_dimension_numbers<[1], [0], [0], [1], [0, 0, 1, 1], [], []>} : vector<64x16xbf16>, vector<16x128xbf16>, vector<64x128xf32> -> vector<64x128xf32>
    %c0_3 = arith.constant 0 : index
    %c0_4 = arith.constant 0 : index
    %3 = vector.load %arg3[%c0_3, %c0_4] : memref<1x128xf32, #tpu.memory_space<vmem>>, vector<1x128xf32>
    %4 = vector.broadcast %3 : vector<1x128xf32> to vector<64x128xf32>
    %5 = arith.addf %2, %4 : vector<64x128xf32>
    %c0_5 = arith.constant 0 : index
    %c0_6 = arith.constant 0 : index
    %6 = vector.load %arg7[%c0_5, %c0_6] : memref<64x128xf32, #tpu.memory_space<vmem>>, vector<64x128xf32>
    tpu.vector_store %arg7[%c0_5, %c0_6], %5 {strides = array<i32>} : memref<64x128xf32, #tpu.memory_space<vmem>>, vector<64x128xf32>,
    %c0_7 = arith.constant 0 : index
    %c0_8 = arith.constant 0 : index
    %7 = vector.load %arg2[%c0_7, %c0_8] : memref<32x128xbf16, #tpu.memory_space<vmem>>, vector<32x128xbf16>
    %cst_9 = arith.constant 0.000000e+00 : f32
    %8 = vector.broadcast %cst_9 : f32 to vector<8x32xf32>
    %cst_10 = arith.constant 0.000000e+00 : f32
    %9 = vector.broadcast %cst_10 : f32 to vector<8x32xf32>
    %c0_11 = arith.constant 0 : index
    %c0_12 = arith.constant 0 : index
    %10 = vector.load %arg7[%c0_11, %c0_12] : memref<64x128xf32, #tpu.memory_space<vmem>>, vector<8x128xf32>
    %11 = arith.truncf %8 : vector<8x32xf32> to vector<8x32xbf16>
    %cst_13 = arith.constant dense<0.000000e+00> : vector<8x128xf32>
    %12 = tpu.matmul %11, %7, %cst_13 {dimension_numbers = #tpu.dot_dimension_numbers<[1], [0], [0], [1], [0, 0, 1, 1], [], []>} : vector<8x32xbf16>, vector<32x128xbf16>, vector<8x128xf32> -> vector<8x128xf32>
    %13 = arith.addf %10, %12 : vector<8x128xf32>
    %14 = arith.negf %13 : vector<8x128xf32>
    %15 = math.exp %14 : vector<8x128xf32>
    %cst_14 = arith.constant 1.000000e+00 : f32
    %16 = vector.broadcast %cst_14 : f32 to vector<8x128xf32>
    %17 = arith.addf %16, %15 : vector<8x128xf32>
    %18 = arith.divf %16, %17 : vector<8x128xf32>
    %19 = math.tanh %13 : vector<8x128xf32>
    %20 = vector.extract_strided_slice %18 {offsets = [0, 0], sizes = [8, 32], strides = [1, 1]} : vector<8x128xf32> to vector<8x32xf32>
    %21 = vector.extract_strided_slice %18 {offsets = [0, 32], sizes = [8, 32], strides = [1, 1]} : vector<8x128xf32> to vector<8x32xf32>
    %22 = vector.extract_strided_slice %19 {offsets = [0, 64], sizes = [8, 32], strides = [1, 1]} : vector<8x128xf32> to vector<8x32xf32>
    %23 = vector.extract_strided_slice %18 {offsets = [0, 96], sizes = [8, 32], strides = [1, 1]} : vector<8x128xf32> to vector<8x32xf32>
    %24 = arith.mulf %21, %9 : vector<8x32xf32>
    %25 = arith.mulf %20, %22 : vector<8x32xf32>
    %26 = arith.addf %24, %25 : vector<8x32xf32>
    %27 = math.tanh %26 : vector<8x32xf32>
    %28 = arith.mulf %23, %27 : vector<8x32xf32>
    %c8 = arith.constant 8 : index
    %c0_15 = arith.constant 0 : index
    %29 = vector.load %arg7[%c8, %c0_15] : memref<64x128xf32, #tpu.memory_space<vmem>>, vector<8x128xf32>
    %30 = arith.truncf %28 : vector<8x32xf32> to vector<8x32xbf16>
    %cst_16 = arith.constant dense<0.000000e+00> : vector<8x128xf32>
    %31 = tpu.matmul %30, %7, %cst_16 {dimension_numbers = #tpu.dot_dimension_numbers<[1], [0], [0], [1], [0, 0, 1, 1], [], []>} : vector<8x32xbf16>, vector<32x128xbf16>, vector<8x128xf32> -> vector<8x128xf32>
    %32 = arith.addf %29, %31 : vector<8x128xf32>
    %33 = arith.negf %32 : vector<8x128xf32>
    %34 = math.exp %33 : vector<8x128xf32>
    %cst_17 = arith.constant 1.000000e+00 : f32
    %35 = vector.broadcast %cst_17 : f32 to vector<8x128xf32>
    %36 = arith.addf %35, %34 : vector<8x128xf32>
    %37 = arith.divf %35, %36 : vector<8x128xf32>
    %38 = math.tanh %32 : vector<8x128xf32>
    %39 = vector.extract_strided_slice %37 {offsets = [0, 0], sizes = [8, 32], strides = [1, 1]} : vector<8x128xf32> to vector<8x32xf32>
    %40 = vector.extract_strided_slice %37 {offsets = [0, 32], sizes = [8, 32], strides = [1, 1]} : vector<8x128xf32> to vector<8x32xf32>
    %41 = vector.extract_strided_slice %38 {offsets = [0, 64], sizes = [8, 32], strides = [1, 1]} : vector<8x128xf32> to vector<8x32xf32>
    %42 = vector.extract_strided_slice %37 {offsets = [0, 96], sizes = [8, 32], strides = [1, 1]} : vector<8x128xf32> to vector<8x32xf32>
    %43 = arith.mulf %40, %26 : vector<8x32xf32>
    %44 = arith.mulf %39, %41 : vector<8x32xf32>
    %45 = arith.addf %43, %44 : vector<8x32xf32>
    %46 = math.tanh %45 : vector<8x32xf32>
    %47 = arith.mulf %42, %46 : vector<8x32xf32>
    %c16 = arith.constant 16 : index
    %c0_18 = arith.constant 0 : index
    %48 = vector.load %arg7[%c16, %c0_18] : memref<64x128xf32, #tpu.memory_space<vmem>>, vector<8x128xf32>
    %49 = arith.truncf %47 : vector<8x32xf32> to vector<8x32xbf16>
    %cst_19 = arith.constant dense<0.000000e+00> : vector<8x128xf32>
    %50 = tpu.matmul %49, %7, %cst_19 {dimension_numbers = #tpu.dot_dimension_numbers<[1], [0], [0], [1], [0, 0, 1, 1], [], []>} : vector<8x32xbf16>, vector<32x128xbf16>, vector<8x128xf32> -> vector<8x128xf32>
    %51 = arith.addf %48, %50 : vector<8x128xf32>
    %52 = arith.negf %51 : vector<8x128xf32>
    %53 = math.exp %52 : vector<8x128xf32>
    %cst_20 = arith.constant 1.000000e+00 : f32
    %54 = vector.broadcast %cst_20 : f32 to vector<8x128xf32>
    %55 = arith.addf %54, %53 : vector<8x128xf32>
    %56 = arith.divf %54, %55 : vector<8x128xf32>
    %57 = math.tanh %51 : vector<8x128xf32>
    %58 = vector.extract_strided_slice %56 {offsets = [0, 0], sizes = [8, 32], strides = [1, 1]} : vector<8x128xf32> to vector<8x32xf32>
    %59 = vector.extract_strided_slice %56 {offsets = [0, 32], sizes = [8, 32], strides = [1, 1]} : vector<8x128xf32> to vector<8x32xf32>
    %60 = vector.extract_strided_slice %57 {offsets = [0, 64], sizes = [8, 32], strides = [1, 1]} : vector<8x128xf32> to vector<8x32xf32>
    %61 = vector.extract_strided_slice %56 {offsets = [0, 96], sizes = [8, 32], strides = [1, 1]} : vector<8x128xf32> to vector<8x32xf32>
    %62 = arith.mulf %59, %45 : vector<8x32xf32>
    %63 = arith.mulf %58, %60 : vector<8x32xf32>
    %64 = arith.addf %62, %63 : vector<8x32xf32>
    %65 = math.tanh %64 : vector<8x32xf32>
    %66 = arith.mulf %61, %65 : vector<8x32xf32>
    %c24 = arith.constant 24 : index
    %c0_21 = arith.constant 0 : index
    %67 = vector.load %arg7[%c24, %c0_21] : memref<64x128xf32, #tpu.memory_space<vmem>>, vector<8x128xf32>
    %68 = arith.truncf %66 : vector<8x32xf32> to vector<8x32xbf16>
    %cst_22 = arith.constant dense<0.000000e+00> : vector<8x128xf32>
    %69 = tpu.matmul %68, %7, %cst_22 {dimension_numbers = #tpu.dot_dimension_numbers<[1], [0], [0], [1], [0, 0, 1, 1], [], []>} : vector<8x32xbf16>, vector<32x128xbf16>, vector<8x128xf32> -> vector<8x128xf32>
    %70 = arith.addf %67, %69 : vector<8x128xf32>
    %71 = arith.negf %70 : vector<8x128xf32>
    %72 = math.exp %71 : vector<8x128xf32>
    %cst_23 = arith.constant 1.000000e+00 : f32
    %73 = vector.broadcast %cst_23 : f32 to vector<8x128xf32>
    %74 = arith.addf %73, %72 : vector<8x128xf32>
    %75 = arith.divf %73, %74 : vector<8x128xf32>
    %76 = math.tanh %70 : vector<8x128xf32>
    %77 = vector.extract_strided_slice %75 {offsets = [0, 0], sizes = [8, 32], strides = [1, 1]} : vector<8x128xf32> to vector<8x32xf32>
    %78 = vector.extract_strided_slice %75 {offsets = [0, 32], sizes = [8, 32], strides = [1, 1]} : vector<8x128xf32> to vector<8x32xf32>
    %79 = vector.extract_strided_slice %76 {offsets = [0, 64], sizes = [8, 32], strides = [1, 1]} : vector<8x128xf32> to vector<8x32xf32>
    %80 = vector.extract_strided_slice %75 {offsets = [0, 96], sizes = [8, 32], strides = [1, 1]} : vector<8x128xf32> to vector<8x32xf32>
    %81 = arith.mulf %78, %64 : vector<8x32xf32>
    %82 = arith.mulf %77, %79 : vector<8x32xf32>
    %83 = arith.addf %81, %82 : vector<8x32xf32>
    %84 = math.tanh %83 : vector<8x32xf32>
    %85 = arith.mulf %80, %84 : vector<8x32xf32>
    %c32 = arith.constant 32 : index
    %c0_24 = arith.constant 0 : index
    %86 = vector.load %arg7[%c32, %c0_24] : memref<64x128xf32, #tpu.memory_space<vmem>>, vector<8x128xf32>
    %87 = arith.truncf %85 : vector<8x32xf32> to vector<8x32xbf16>
    %cst_25 = arith.constant dense<0.000000e+00> : vector<8x128xf32>
    %88 = tpu.matmul %87, %7, %cst_25 {dimension_numbers = #tpu.dot_dimension_numbers<[1], [0], [0], [1], [0, 0, 1, 1], [], []>} : vector<8x32xbf16>, vector<32x128xbf16>, vector<8x128xf32> -> vector<8x128xf32>
    %89 = arith.addf %86, %88 : vector<8x128xf32>
    %90 = arith.negf %89 : vector<8x128xf32>
    %91 = math.exp %90 : vector<8x128xf32>
    %cst_26 = arith.constant 1.000000e+00 : f32
    %92 = vector.broadcast %cst_26 : f32 to vector<8x128xf32>
    %93 = arith.addf %92, %91 : vector<8x128xf32>
    %94 = arith.divf %92, %93 : vector<8x128xf32>
    %95 = math.tanh %89 : vector<8x128xf32>
    %96 = vector.extract_strided_slice %94 {offsets = [0, 0], sizes = [8, 32], strides = [1, 1]} : vector<8x128xf32> to vector<8x32xf32>
    %97 = vector.extract_strided_slice %94 {offsets = [0, 32], sizes = [8, 32], strides = [1, 1]} : vector<8x128xf32> to vector<8x32xf32>
    %98 = vector.extract_strided_slice %95 {offsets = [0, 64], sizes = [8, 32], strides = [1, 1]} : vector<8x128xf32> to vector<8x32xf32>
    %99 = vector.extract_strided_slice %94 {offsets = [0, 96], sizes = [8, 32], strides = [1, 1]} : vector<8x128xf32> to vector<8x32xf32>
    %100 = arith.mulf %97, %83 : vector<8x32xf32>
    %101 = arith.mulf %96, %98 : vector<8x32xf32>
    %102 = arith.addf %100, %101 : vector<8x32xf32>
    %103 = math.tanh %102 : vector<8x32xf32>
    %104 = arith.mulf %99, %103 : vector<8x32xf32>
    %c40 = arith.constant 40 : index
    %c0_27 = arith.constant 0 : index
    %105 = vector.load %arg7[%c40, %c0_27] : memref<64x128xf32, #tpu.memory_space<vmem>>, vector<8x128xf32>
    %106 = arith.truncf %104 : vector<8x32xf32> to vector<8x32xbf16>
    %cst_28 = arith.constant dense<0.000000e+00> : vector<8x128xf32>
    %107 = tpu.matmul %106, %7, %cst_28 {dimension_numbers = #tpu.dot_dimension_numbers<[1], [0], [0], [1], [0, 0, 1, 1], [], []>} : vector<8x32xbf16>, vector<32x128xbf16>, vector<8x128xf32> -> vector<8x128xf32>
    %108 = arith.addf %105, %107 : vector<8x128xf32>
    %109 = arith.negf %108 : vector<8x128xf32>
    %110 = math.exp %109 : vector<8x128xf32>
    %cst_29 = arith.constant 1.000000e+00 : f32
    %111 = vector.broadcast %cst_29 : f32 to vector<8x128xf32>
    %112 = arith.addf %111, %110 : vector<8x128xf32>
    %113 = arith.divf %111, %112 : vector<8x128xf32>
    %114 = math.tanh %108 : vector<8x128xf32>
    %115 = vector.extract_strided_slice %113 {offsets = [0, 0], sizes = [8, 32], strides = [1, 1]} : vector<8x128xf32> to vector<8x32xf32>
    %116 = vector.extract_strided_slice %113 {offsets = [0, 32], sizes = [8, 32], strides = [1, 1]} : vector<8x128xf32> to vector<8x32xf32>
    %117 = vector.extract_strided_slice %114 {offsets = [0, 64], sizes = [8, 32], strides = [1, 1]} : vector<8x128xf32> to vector<8x32xf32>
    %118 = vector.extract_strided_slice %113 {offsets = [0, 96], sizes = [8, 32], strides = [1, 1]} : vector<8x128xf32> to vector<8x32xf32>
    %119 = arith.mulf %116, %102 : vector<8x32xf32>
    %120 = arith.mulf %115, %117 : vector<8x32xf32>
    %121 = arith.addf %119, %120 : vector<8x32xf32>
    %122 = math.tanh %121 : vector<8x32xf32>
    %123 = arith.mulf %118, %122 : vector<8x32xf32>
    %c48 = arith.constant 48 : index
    %c0_30 = arith.constant 0 : index
    %124 = vector.load %arg7[%c48, %c0_30] : memref<64x128xf32, #tpu.memory_space<vmem>>, vector<8x128xf32>
    %125 = arith.truncf %123 : vector<8x32xf32> to vector<8x32xbf16>
    %cst_31 = arith.constant dense<0.000000e+00> : vector<8x128xf32>
    %126 = tpu.matmul %125, %7, %cst_31 {dimension_numbers = #tpu.dot_dimension_numbers<[1], [0], [0], [1], [0, 0, 1, 1], [], []>} : vector<8x32xbf16>, vector<32x128xbf16>, vector<8x128xf32> -> vector<8x128xf32>
    %127 = arith.addf %124, %126 : vector<8x128xf32>
    %128 = arith.negf %127 : vector<8x128xf32>
    %129 = math.exp %128 : vector<8x128xf32>
    %cst_32 = arith.constant 1.000000e+00 : f32
    %130 = vector.broadcast %cst_32 : f32 to vector<8x128xf32>
    %131 = arith.addf %130, %129 : vector<8x128xf32>
    %132 = arith.divf %130, %131 : vector<8x128xf32>
    %133 = math.tanh %127 : vector<8x128xf32>
    %134 = vector.extract_strided_slice %132 {offsets = [0, 0], sizes = [8, 32], strides = [1, 1]} : vector<8x128xf32> to vector<8x32xf32>
    %135 = vector.extract_strided_slice %132 {offsets = [0, 32], sizes = [8, 32], strides = [1, 1]} : vector<8x128xf32> to vector<8x32xf32>
    %136 = vector.extract_strided_slice %133 {offsets = [0, 64], sizes = [8, 32], strides = [1, 1]} : vector<8x128xf32> to vector<8x32xf32>
    %137 = vector.extract_strided_slice %132 {offsets = [0, 96], sizes = [8, 32], strides = [1, 1]} : vector<8x128xf32> to vector<8x32xf32>
    %138 = arith.mulf %135, %121 : vector<8x32xf32>
    %139 = arith.mulf %134, %136 : vector<8x32xf32>
    %140 = arith.addf %138, %139 : vector<8x32xf32>
    %141 = math.tanh %140 : vector<8x32xf32>
    %142 = arith.mulf %137, %141 : vector<8x32xf32>
    %c56 = arith.constant 56 : index
    %c0_33 = arith.constant 0 : index
    %143 = vector.load %arg7[%c56, %c0_33] : memref<64x128xf32, #tpu.memory_space<vmem>>, vector<8x128xf32>
    %144 = arith.truncf %142 : vector<8x32xf32> to vector<8x32xbf16>
    %cst_34 = arith.constant dense<0.000000e+00> : vector<8x128xf32>
    %145 = tpu.matmul %144, %7, %cst_34 {dimension_numbers = #tpu.dot_dimension_numbers<[1], [0], [0], [1], [0, 0, 1, 1], [], []>} : vector<8x32xbf16>, vector<32x128xbf16>, vector<8x128xf32> -> vector<8x128xf32>
    %146 = arith.addf %143, %145 : vector<8x128xf32>
    %147 = arith.negf %146 : vector<8x128xf32>
    %148 = math.exp %147 : vector<8x128xf32>
    %cst_35 = arith.constant 1.000000e+00 : f32
    %149 = vector.broadcast %cst_35 : f32 to vector<8x128xf32>
    %150 = arith.addf %149, %148 : vector<8x128xf32>
    %151 = arith.divf %149, %150 : vector<8x128xf32>
    %152 = math.tanh %146 : vector<8x128xf32>
    %153 = vector.extract_strided_slice %151 {offsets = [0, 0], sizes = [8, 32], strides = [1, 1]} : vector<8x128xf32> to vector<8x32xf32>
    %154 = vector.extract_strided_slice %151 {offsets = [0, 32], sizes = [8, 32], strides = [1, 1]} : vector<8x128xf32> to vector<8x32xf32>
    %155 = vector.extract_strided_slice %152 {offsets = [0, 64], sizes = [8, 32], strides = [1, 1]} : vector<8x128xf32> to vector<8x32xf32>
    %156 = vector.extract_strided_slice %151 {offsets = [0, 96], sizes = [8, 32], strides = [1, 1]} : vector<8x128xf32> to vector<8x32xf32>
    %157 = arith.mulf %154, %140 : vector<8x32xf32>
    %158 = arith.mulf %153, %155 : vector<8x32xf32>
    %159 = arith.addf %157, %158 : vector<8x32xf32>
    %160 = math.tanh %159 : vector<8x32xf32>
    %161 = arith.mulf %156, %160 : vector<8x32xf32>
    %162 = arith.truncf %161 : vector<8x32xf32> to vector<8x32xbf16>
    %c0_36 = arith.constant 0 : index
    %c0_37 = arith.constant 0 : index
    %163 = vector.load %arg4[%c0_36, %c0_37] : memref<32x128xbf16, #tpu.memory_space<vmem>>, vector<32x128xbf16>
    %cst_38 = arith.constant dense<0.000000e+00> : vector<8x128xf32>
    %164 = tpu.matmul %162, %163, %cst_38 {dimension_numbers = #tpu.dot_dimension_numbers<[1], [0], [0], [1], [0, 0, 1, 1], [], []>} : vector<8x32xbf16>, vector<32x128xbf16>, vector<8x128xf32> -> vector<8x128xf32>
    %c0_39 = arith.constant 0 : index
    %c0_40 = arith.constant 0 : index
    %165 = vector.load %arg5[%c0_39, %c0_40] : memref<1x128xf32, #tpu.memory_space<vmem>>, vector<1x128xf32>
    %166 = vector.broadcast %165 : vector<1x128xf32> to vector<8x128xf32>
    %167 = arith.addf %164, %166 : vector<8x128xf32>
    %cst_41 = arith.constant dense<0xFF800000> : vector<8xf32>
    %168 = vector.multi_reduction <maximumf>, %167, %cst_41 [1] : vector<8x128xf32> to vector<8xf32>
    %169 = vector.shape_cast %168 : vector<8xf32> to vector<8x1xf32>
    %170 = vector.broadcast %169 : vector<8x1xf32> to vector<8x128xf32>
    %171 = arith.subf %167, %170 : vector<8x128xf32>
    %172 = math.exp %171 : vector<8x128xf32>
    %cst_42 = arith.constant dense<0.000000e+00> : vector<8xf32>
    %173 = vector.multi_reduction <add>, %172, %cst_42 [1] : vector<8x128xf32> to vector<8xf32>
    %174 = vector.shape_cast %173 : vector<8xf32> to vector<8x1xf32>
    %175 = vector.broadcast %174 : vector<8x1xf32> to vector<8x128xf32>
    %176 = arith.divf %172, %175 : vector<8x128xf32>
    %c0_43 = arith.constant 0 : index
    %c0_44 = arith.constant 0 : index
    %177 = vector.load %arg6[%c0_43, %c0_44] : memref<8x128xf32, #tpu.memory_space<vmem>>, vector<8x128xf32>
    tpu.vector_store %arg6[%c0_43, %c0_44], %176 {strides = array<i32>} : memref<8x128xf32, #tpu.memory_space<vmem>>, vector<8x128xf32>,
    return
  }
}

</mosaic_0001>

<llo_original>
// kernel: tpu_custom_call.1
$region0: #{tpu_custom_call.1}
  #allocation0 [shape = 'u32[]', space=smem, size = 0x4, offset = 0x4, fixed_abs, tag = 'smem constant byte address 0x4 - core index']
  #allocation1 [shape = 'u32[144,128]{1,0:T(1,128)}', space=vmem, size = 0x12000, scoped, tag = 'internal scratch']
  #allocation2 [shape = 'f32[64,128]{1,0:T(8,128)}', space=vmem, size = 0x8000, scoped, tag = 'scratch operand']
  %s0 = inlined_call_operand.vmem [shape: bf16[64,16], index: 0, kind: input, shape index: {}]
  %s1 = inlined_call_operand.vmem [shape: bf16[16,128], index: 1, kind: input, shape index: {}]
  %s2 = inlined_call_operand.vmem [shape: bf16[32,128], index: 2, kind: input, shape index: {}]
  %s3 = inlined_call_operand.vmem [shape: f32[1,128], index: 3, kind: input, shape index: {}]
  %s4 = inlined_call_operand.vmem [shape: bf16[32,128], index: 4, kind: input, shape index: {}]
  %s5 = inlined_call_operand.vmem [shape: f32[1,128], index: 5, kind: input, shape index: {}]
  %s6 = inlined_call_operand.hbm [shape: f32[8,128], index: 6, kind: output, shape index: {}]
  %s7 = sld [smem:[#allocation0]]
  $region34: #{tpu_custom_call.1} parent=0
    _
  %s9 = ssub.s32 1, %s7
  %s10 = scalar_select 0, %s9, %s7
  $region1: #{tpu_custom_call.1} parent=0
    #allocation3 [shape = 'u8[4096]{0}', space=vmem, size = 0x1000, scoped, tag = 'output window, operand 0, single buffered']
    #allocation4 [shape = 's32[1]{0}', space=sflag, size = 0x4, scoped, tag = 'scoped memory for tpu_custom_call.1']
    %11 = vsyncpa [#allocation4], 0
    // Predicated region
    $region2: #{tpu_custom_call.1} parent=1 // pred_check
      _
    $region3: #{tpu_custom_call.1} parent=1 // pred_check_branch
      %13 = sbr.rel (0) target = $region5
    $region4: #{tpu_custom_call.1} parent=1 // pred_region
      _
    $region5: #{tpu_custom_call.1} parent=1 // pred_fallthru
      _
    // Predicated region
    $region6: #{tpu_custom_call.1} parent=1 // pred_check
      _
    $region7: #{tpu_custom_call.1} parent=1 // pred_check_branch
      %15 = sbr.rel (0) target = $region9
    $region8: #{tpu_custom_call.1} parent=1 // pred_region
      _
    $region9: #{tpu_custom_call.1} parent=1 // pred_fallthru
      _
    // Predicated region
    $region10: #{tpu_custom_call.1} parent=1 // pred_check
      _
    $region11: #{tpu_custom_call.1} parent=1 // pred_check_branch
      %17 = sbr.rel (0) target = $region13
    $region12: #{tpu_custom_call.1} parent=1 // pred_region
      _
    $region13: #{tpu_custom_call.1} parent=1 // pred_fallthru
      _
    // Predicated region
    $region14: #{tpu_custom_call.1} parent=1 // pred_check
      _
    $region15: #{tpu_custom_call.1} parent=1 // pred_check_branch
      %19 = sbr.rel (0) target = $region17
    $region16: #{tpu_custom_call.1} parent=1 // pred_region
      _
    $region17: #{tpu_custom_call.1} parent=1 // pred_fallthru
      _
    // Predicated region
    $region18: #{tpu_custom_call.1} parent=1 // pred_check
      _
    $region19: #{tpu_custom_call.1} parent=1 // pred_check_branch
      %21 = sbr.rel (0) target = $region21
    $region20: #{tpu_custom_call.1} parent=1 // pred_region
      _
    $region21: #{tpu_custom_call.1} parent=1 // pred_fallthru
      _
    // Predicated region
    $region22: #{tpu_custom_call.1} parent=1 // pred_check
      _
    $region23: #{tpu_custom_call.1} parent=1 // pred_check_branch
      %23 = sbr.rel (0) target = $region25
    $region24: #{tpu_custom_call.1} parent=1 // pred_region
      _
    $region25: #{tpu_custom_call.1} parent=1 // pred_fallthru
      _
    %v25 = vld [vmem:[%s0] sm:$0xf]
    %v26 = vld [vmem:[%s0 + $0x4] sm:$0xf]
    %v27 = vld [vmem:[%s0 + $0x8] sm:$0xf]
    %v28 = vld [vmem:[%s0 + $0xc] sm:$0xf]
    %v29 = vld [vmem:[%s0 + $0x10] sm:$0xf]
    %v30 = vld [vmem:[%s0 + $0x14] sm:$0xf]
    %v31 = vld [vmem:[%s0 + $0x18] sm:$0xf]
    %v32 = vld [vmem:[%s0 + $0x1c] sm:$0xf]
    %v33 = vld [vmem:[%s1] sm:$0xf]
    %v34 = vld [vmem:[%s1 + $0x4] sm:$0xf]
    %v35 = vld [vmem:[%s3] sm:$0x1]
    %v37 = vlaneseq
    %v38 = vshrl.u32 %v37, 7
    %v39 = vsub.s32 0, %v38
    %v40 = vrot.slane %v35, %v39
    %v50 = vunpack.c.l.b16 %v25
    %v51 = vunpack.c.l.b16 %v26
    %v52 = vunpack.c.l.b16 %v27
    %v53 = vunpack.c.l.b16 %v28
    %v54 = vunpack.c.l.b16 %v29
    %v55 = vunpack.c.l.b16 %v30
    %v56 = vunpack.c.l.b16 %v31
    %v57 = vunpack.c.l.b16 %v32
    %v58 = vpack.c.b16 %v51, %v50
    %v59 = vpack.c.b16 %v53, %v52
    %v60 = vpack.c.b16 %v55, %v54
    %v61 = vpack.c.b16 %v57, %v56
    %v64 = vunpack.c.l.b16 %v33
    %v65 = vunpack.c.l.b16 %v34
    %v66 = vpack.c.b16 %v65, %v64
    %vm68 = vcmask 130048
    %v70 = vsel %vm68, %v58, 0
    %v73 = vsel %vm68, %v59, 0
    %v76 = vsel %vm68, %v60, 0
    %v79 = vsel %vm68, %v61, 0
    %81 = vmatprep.subr.bf16.mxu0 0
    %82 = vmatpush1.bf16.msra.mxu0 %v66
    %83 = vmatprep.subr.bf16.mxu0 0
    %84 = vmatpush1.bf16.msra.mxu0 0
    %85 = vmatprep.subr.bf16.mxu0 0
    %86 = vmatpush1.bf16.msra.mxu0 0
    %87 = vmatprep.subr.bf16.mxu0 0
    %88 = vmatpush1.bf16.msra.mxu0 0
    %89 = vmatprep.subr.bf16.mxu0 0
    %90 = vmatpush1.bf16.msra.mxu0 0
    %91 = vmatprep.subr.bf16.mxu0 0
    %92 = vmatpush1.bf16.msra.mxu0 0
    %93 = vmatprep.subr.bf16.mxu0 0
    %94 = vmatpush1.bf16.msra.mxu0 0
    %95 = vmatprep.subr.bf16.mxu0 0
    %96 = vmatpush1.bf16.msra.mxu0 0
    %97 = vmatprep.subr.bf16.mxu0 0
    %98 = vmatpush1.bf16.msra.mxu0 0
    %99 = vmatprep.subr.bf16.mxu0 0
    %100 = vmatpush1.bf16.msra.mxu0 0
    %101 = vmatprep.subr.bf16.mxu0 0
    %102 = vmatpush1.bf16.msra.mxu0 0
    %103 = vmatprep.subr.bf16.mxu0 0
    %104 = vmatpush1.bf16.msra.mxu0 0
    %105 = vmatprep.subr.bf16.mxu0 0
    %106 = vmatpush1.bf16.msra.mxu0 0
    %107 = vmatprep.subr.bf16.mxu0 0
    %108 = vmatpush1.bf16.msra.mxu0 0
    %109 = vmatprep.subr.bf16.mxu0 0
    %110 = vmatpush1.bf16.msra.mxu0 0
    %111 = vmatprep.subr.bf16.mxu0 0
    %112 = vmatpush1.bf16.msra.mxu0 0
    %113 = vmatprep.mubr.bf16.mxu0 0
    %114 = vmatmul.mubr.bf16.gmra.mrb[0].mxu0 %v70
    %v115 = vpop.f32.mrb[0].mxu0
    %v116 = vadd.f32 %v40, %v115
    %v117 = vpop.f32.mrb[0].mxu0
    %v118 = vpop.f32.mrb[0].mxu0
    %v119 = vadd.f32 %v40, %v118
    %v120 = vpop.f32.mrb[0].mxu0
    %121 = vmatprep.mubr.bf16.mxu0 0
    %122 = vmatmul.mubr.bf16.gmra.mrb[0].mxu0 %v73
    %v123 = vpop.f32.mrb[0].mxu0
    %v124 = vadd.f32 %v40, %v123
    %v125 = vpop.f32.mrb[0].mxu0
    %v126 = vpop.f32.mrb[0].mxu0
    %v127 = vadd.f32 %v40, %v126
    %v128 = vpop.f32.mrb[0].mxu0
    %129 = vmatprep.mubr.bf16.mxu0 0
    %130 = vmatmul.mubr.bf16.gmra.mrb[0].mxu0 %v76
    %v131 = vpop.f32.mrb[0].mxu0
    %v132 = vadd.f32 %v40, %v131
    %v133 = vpop.f32.mrb[0].mxu0
    %v134 = vpop.f32.mrb[0].mxu0
    %v135 = vadd.f32 %v40, %v134
    %v136 = vpop.f32.mrb[0].mxu0
    %137 = vmatprep.mubr.bf16.mxu0 0
    %138 = vmatmul.mubr.bf16.gmra.mrb[0].mxu0 %v79
    %v139 = vpop.f32.mrb[0].mxu0
    %v140 = vadd.f32 %v40, %v139
    %v141 = vpop.f32.mrb[0].mxu0
    %v142 = vpop.f32.mrb[0].mxu0
    %v143 = vadd.f32 %v40, %v142
    %v144 = vpop.f32.mrb[0].mxu0
    %145 = vdwg.mxu0
    %146 = vst [vmem:[#allocation2] sm:$0xff] %v116
    %147 = vst [vmem:[#allocation2 + $0x8] sm:$0xff] %v119
    %148 = vst [vmem:[#allocation2 + $0x10] sm:$0xff] %v124
    %149 = vst [vmem:[#allocation2 + $0x18] sm:$0xff] %v127
    %150 = vst [vmem:[#allocation2 + $0x20] sm:$0xff] %v132
    %151 = vst [vmem:[#allocation2 + $0x28] sm:$0xff] %v135
    %152 = vst [vmem:[#allocation2 + $0x30] sm:$0xff] %v140
    %153 = vst [vmem:[#allocation2 + $0x38] sm:$0xff] %v143
    %v154 = vld [vmem:[%s2] sm:$0xf]
    %v155 = vld [vmem:[%s2 + $0x4] sm:$0xf]
    %v156 = vld [vmem:[%s2 + $0x8] sm:$0xf]
    %v157 = vld [vmem:[%s2 + $0xc] sm:$0xf]
    %v158 = vld [vmem:[#allocation2] sm:$0xff]
    %v163 = vunpack.c.l.b16 %v154
    %v164 = vunpack.c.l.b16 %v155
    %v165 = vunpack.c.l.b16 %v156
    %v166 = vunpack.c.l.b16 %v157
    %v167 = vpack.c.b16 %v164, %v163
    %v168 = vpack.c.b16 %v166, %v165
    %vm171 = vcmask 261120
    %v173 = vsel %vm171, 0, 0
    %175 = vmatprep.subr.bf16.mxu0 0
    %176 = vmatpush1.bf16.msra.mxu0 %v167
    %177 = vmatprep.subr.bf16.mxu0 0
    %178 = vmatpush1.bf16.msra.mxu0 %v168
    %179 = vmatprep.subr.bf16.mxu0 0
    %180 = vmatpush1.bf16.msra.mxu0 0
    %181 = vmatprep.subr.bf16.mxu0 0
    %182 = vmatpush1.bf16.msra.mxu0 0
    %183 = vmatprep.subr.bf16.mxu0 0
    %184 = vmatpush1.bf16.msra.mxu0 0
    %185 = vmatprep.subr.bf16.mxu0 0
    %186 = vmatpush1.bf16.msra.mxu0 0
    %187 = vmatprep.subr.bf16.mxu0 0
    %188 = vmatpush1.bf16.msra.mxu0 0
    %189 = vmatprep.subr.bf16.mxu0 0
    %190 = vmatpush1.bf16.msra.mxu0 0
    %191 = vmatprep.subr.bf16.mxu0 0
    %192 = vmatpush1.bf16.msra.mxu0 0
    %193 = vmatprep.subr.bf16.mxu0 0
    %194 = vmatpush1.bf16.msra.mxu0 0
    %195 = vmatprep.subr.bf16.mxu0 0
    %196 = vmatpush1.bf16.msra.mxu0 0
    %197 = vmatprep.subr.bf16.mxu0 0
    %198 = vmatpush1.bf16.msra.mxu0 0
    %199 = vmatprep.subr.bf16.mxu0 0
    %200 = vmatpush1.bf16.msra.mxu0 0
    %201 = vmatprep.subr.bf16.mxu0 0
    %202 = vmatpush1.bf16.msra.mxu0 0
    %203 = vmatprep.subr.bf16.mxu0 0
    %204 = vmatpush1.bf16.msra.mxu0 0
    %205 = vmatprep.subr.bf16.mxu0 0
    %206 = vmatpush1.bf16.msra.mxu0 0
    %207 = vmatprep.mubr.bf16.mxu0 0
    %208 = vmatmul.mubr.bf16.gmra.mrb[0].mxu0 %v173
    %v209 = vpop.f32.mrb[0].mxu0
    %v210 = vadd.f32 0.0, %v209
    %v211 = vpop.f32.mrb[0].mxu0
    %v212 = vpop.f32.mrb[0].mxu0
    %v213 = vpop.f32.mrb[0].mxu0
    %214 = vdwg.mxu0
    %v215 = vadd.f32 %v158, %v210
    %v216 = vxor.u32 %v215, 2147483648
    %v217 = vmul.f32 %v216, 1.442695
    %v218 = vpow.pop %v217
    %v219 = vadd.f32 %v218, 1.0
    %v220 = vrcp.pop %v219
    %v221 = vmul.f32 1.0, %v220
    %v222 = vtanh.pop %v215
    %v223 = vmul.f32 %v221, 0.0
    %225 = vrot.lane.b32.xlu0 %v222, 64
    %v226 = vpop.permute.xlu0 %225
    %v228 = vmul.f32 %v221, %v226
    %230 = vrot.lane.b32.xlu0 %v228, 32
    %v231 = vpop.permute.xlu0 %230
    %v233 = vadd.f32 %v223, %v231
    %v234 = vtanh.pop %v233
    %236 = vrot.lane.b32.xlu0 %v234, 64
    %v237 = vpop.permute.xlu0 %236
    %v239 = vmul.f32 %v221, %v237
    %v240 = vld [vmem:[#allocation2 + $0x8] sm:$0xff]
    %v241 = vpack.c.bf16 %v239, %v239
    %243 = vrot.lane.b32.xlu0 %v241, 32
    %v244 = vpop.permute.xlu0 %243
    %v246 = vsel %vm171, %v244, 0
    %248 = vmatprep.subr.bf16.mxu0 0
    %249 = vmatpush1.bf16.msra.mxu0 %v167
    %250 = vmatprep.subr.bf16.mxu0 0
    %251 = vmatpush1.bf16.msra.mxu0 %v168
    %252 = vmatprep.subr.bf16.mxu0 0
    %253 = vmatpush1.bf16.msra.mxu0 0
    %254 = vmatprep.subr.bf16.mxu0 0
    %255 = vmatpush1.bf16.msra.mxu0 0
    %256 = vmatprep.subr.bf16.mxu0 0
    %257 = vmatpush1.bf16.msra.mxu0 0
    %258 = vmatprep.subr.bf16.mxu0 0
    %259 = vmatpush1.bf16.msra.mxu0 0
    %260 = vmatprep.subr.bf16.mxu0 0
    %261 = vmatpush1.bf16.msra.mxu0 0
    %262 = vmatprep.subr.bf16.mxu0 0
    %263 = vmatpush1.bf16.msra.mxu0 0
    %264 = vmatprep.subr.bf16.mxu0 0
    %265 = vmatpush1.bf16.msra.mxu0 0
    %266 = vmatprep.subr.bf16.mxu0 0
    %267 = vmatpush1.bf16.msra.mxu0 0
    %268 = vmatprep.subr.bf16.mxu0 0
    %269 = vmatpush1.bf16.msra.mxu0 0
    %270 = vmatprep.subr.bf16.mxu0 0
    %271 = vmatpush1.bf16.msra.mxu0 0
    %272 = vmatprep.subr.bf16.mxu0 0
    %273 = vmatpush1.bf16.msra.mxu0 0
    %274 = vmatprep.subr.bf16.mxu0 0
    %275 = vmatpush1.bf16.msra.mxu0 0
    %276 = vmatprep.subr.bf16.mxu0 0
    %277 = vmatpush1.bf16.msra.mxu0 0
    %278 = vmatprep.subr.bf16.mxu0 0
    %279 = vmatpush1.bf16.msra.mxu0 0
    %280 = vmatprep.mubr.bf16.mxu0 0
    %281 = vmatmul.mubr.bf16.gmra.mrb[0].mxu0 %v246
    %v282 = vpop.f32.mrb[0].mxu0
    %v283 = vadd.f32 0.0, %v282
    %v284 = vpop.f32.mrb[0].mxu0
    %v285 = vpop.f32.mrb[0].mxu0
    %v286 = vpop.f32.mrb[0].mxu0
    %287 = vdwg.mxu0
    %v288 = vadd.f32 %v240, %v283
    %v289 = vxor.u32 %v288, 2147483648
    %v290 = vmul.f32 %v289, 1.442695
    %v291 = vpow.pop %v290
    %v292 = vadd.f32 %v291, 1.0
    %v293 = vrcp.pop %v292
    %v294 = vmul.f32 1.0, %v293
    %v295 = vtanh.pop %v288
    %v296 = vmul.f32 %v294, %v233
    %298 = vrot.lane.b32.xlu0 %v295, 64
    %v299 = vpop.permute.xlu0 %298
    %v301 = vmul.f32 %v294, %v299
    %303 = vrot.lane.b32.xlu0 %v301, 32
    %v304 = vpop.permute.xlu0 %303
    %v306 = vadd.f32 %v296, %v304
    %v307 = vtanh.pop %v306
    %309 = vrot.lane.b32.xlu0 %v307, 64
    %v310 = vpop.permute.xlu0 %309
    %v312 = vmul.f32 %v294, %v310
    %v313 = vld [vmem:[#allocation2 + $0x10] sm:$0xff]
    %v314 = vpack.c.bf16 %v312, %v312
    %316 = vrot.lane.b32.xlu0 %v314, 32
    %v317 = vpop.permute.xlu0 %316
    %v319 = vsel %vm171, %v317, 0
    %321 = vmatprep.subr.bf16.mxu0 0
    %322 = vmatpush1.bf16.msra.mxu0 %v167
    %323 = vmatprep.subr.bf16.mxu0 0
    %324 = vmatpush1.bf16.msra.mxu0 %v168
    %325 = vmatprep.subr.bf16.mxu0 0
    %326 = vmatpush1.bf16.msra.mxu0 0
    %327 = vmatprep.subr.bf16.mxu0 0
    %328 = vmatpush1.bf16.msra.mxu0 0
    %329 = vmatprep.subr.bf16.mxu0 0
    %330 = vmatpush1.bf16.msra.mxu0 0
    %331 = vmatprep.subr.bf16.mxu0 0
    %332 = vmatpush1.bf16.msra.mxu0 0
    %333 = vmatprep.subr.bf16.mxu0 0
    %334 = vmatpush1.bf16.msra.mxu0 0
    %335 = vmatprep.subr.bf16.mxu0 0
    %336 = vmatpush1.bf16.msra.mxu0 0
    %337 = vmatprep.subr.bf16.mxu0 0
    %338 = vmatpush1.bf16.msra.mxu0 0
    %339 = vmatprep.subr.bf16.mxu0 0
    %340 = vmatpush1.bf16.msra.mxu0 0
    %341 = vmatprep.subr.bf16.mxu0 0
    %342 = vmatpush1.bf16.msra.mxu0 0
    %343 = vmatprep.subr.bf16.mxu0 0
    %344 = vmatpush1.bf16.msra.mxu0 0
    %345 = vmatprep.subr.bf16.mxu0 0
    %346 = vmatpush1.bf16.msra.mxu0 0
    %347 = vmatprep.subr.bf16.mxu0 0
    %348 = vmatpush1.bf16.msra.mxu0 0
    %349 = vmatprep.subr.bf16.mxu0 0
    %350 = vmatpush1.bf16.msra.mxu0 0
    %351 = vmatprep.subr.bf16.mxu0 0
    %352 = vmatpush1.bf16.msra.mxu0 0
    %353 = vmatprep.mubr.bf16.mxu0 0
    %354 = vmatmul.mubr.bf16.gmra.mrb[0].mxu0 %v319
    %v355 = vpop.f32.mrb[0].mxu0
    %v356 = vadd.f32 0.0, %v355
    %v357 = vpop.f32.mrb[0].mxu0
    %v358 = vpop.f32.mrb[0].mxu0
    %v359 = vpop.f32.mrb[0].mxu0
    %360 = vdwg.mxu0
    %v361 = vadd.f32 %v313, %v356
    %v362 = vxor.u32 %v361, 2147483648
    %v363 = vmul.f32 %v362, 1.442695
    %v364 = vpow.pop %v363
    %v365 = vadd.f32 %v364, 1.0
    %v366 = vrcp.pop %v365
    %v367 = vmul.f32 1.0, %v366
    %v368 = vtanh.pop %v361
    %v369 = vmul.f32 %v367, %v306
    %371 = vrot.lane.b32.xlu0 %v368, 64
    %v372 = vpop.permute.xlu0 %371
    %v374 = vmul.f32 %v367, %v372
    %376 = vrot.lane.b32.xlu0 %v374, 32
    %v377 = vpop.permute.xlu0 %376
    %v379 = vadd.f32 %v369, %v377
    %v380 = vtanh.pop %v379
    %382 = vrot.lane.b32.xlu0 %v380, 64
    %v383 = vpop.permute.xlu0 %382
    %v385 = vmul.f32 %v367, %v383
    %v386 = vld [vmem:[#allocation2 + $0x18] sm:$0xff]
    %v387 = vpack.c.bf16 %v385, %v385
    %389 = vrot.lane.b32.xlu0 %v387, 32
    %v390 = vpop.permute.xlu0 %389
    %v392 = vsel %vm171, %v390, 0
    %394 = vmatprep.subr.bf16.mxu0 0
    %395 = vmatpush1.bf16.msra.mxu0 %v167
    %396 = vmatprep.subr.bf16.mxu0 0
    %397 = vmatpush1.bf16.msra.mxu0 %v168
    %398 = vmatprep.subr.bf16.mxu0 0
    %399 = vmatpush1.bf16.msra.mxu0 0
    %400 = vmatprep.subr.bf16.mxu0 0
    %401 = vmatpush1.bf16.msra.mxu0 0
    %402 = vmatprep.subr.bf16.mxu0 0
    %403 = vmatpush1.bf16.msra.mxu0 0
    %404 = vmatprep.subr.bf16.mxu0 0
    %405 = vmatpush1.bf16.msra.mxu0 0
    %406 = vmatprep.subr.bf16.mxu0 0
    %407 = vmatpush1.bf16.msra.mxu0 0
    %408 = vmatprep.subr.bf16.mxu0 0
    %409 = vmatpush1.bf16.msra.mxu0 0
    %410 = vmatprep.subr.bf16.mxu0 0
    %411 = vmatpush1.bf16.msra.mxu0 0
    %412 = vmatprep.subr.bf16.mxu0 0
    %413 = vmatpush1.bf16.msra.mxu0 0
    %414 = vmatprep.subr.bf16.mxu0 0
    %415 = vmatpush1.bf16.msra.mxu0 0
    %416 = vmatprep.subr.bf16.mxu0 0
    %417 = vmatpush1.bf16.msra.mxu0 0
    %418 = vmatprep.subr.bf16.mxu0 0
    %419 = vmatpush1.bf16.msra.mxu0 0
    %420 = vmatprep.subr.bf16.mxu0 0
    %421 = vmatpush1.bf16.msra.mxu0 0
    %422 = vmatprep.subr.bf16.mxu0 0
    %423 = vmatpush1.bf16.msra.mxu0 0
    %424 = vmatprep.subr.bf16.mxu0 0
    %425 = vmatpush1.bf16.msra.mxu0 0
    %426 = vmatprep.mubr.bf16.mxu0 0
    %427 = vmatmul.mubr.bf16.gmra.mrb[0].mxu0 %v392
    %v428 = vpop.f32.mrb[0].mxu0
    %v429 = vadd.f32 0.0, %v428
    %v430 = vpop.f32.mrb[0].mxu0
    %v431 = vpop.f32.mrb[0].mxu0
    %v432 = vpop.f32.mrb[0].mxu0
    %433 = vdwg.mxu0
    %v434 = vadd.f32 %v386, %v429
    %v435 = vxor.u32 %v434, 2147483648
    %v436 = vmul.f32 %v435, 1.442695
    %v437 = vpow.pop %v436
    %v438 = vadd.f32 %v437, 1.0
    %v439 = vrcp.pop %v438
    %v440 = vmul.f32 1.0, %v439
    %v441 = vtanh.pop %v434
    %v442 = vmul.f32 %v440, %v379
    %444 = vrot.lane.b32.xlu0 %v441, 64
    %v445 = vpop.permute.xlu0 %444
    %v447 = vmul.f32 %v440, %v445
    %449 = vrot.lane.b32.xlu0 %v447, 32
    %v450 = vpop.permute.xlu0 %449
    %v452 = vadd.f32 %v442, %v450
    %v453 = vtanh.pop %v452
    %455 = vrot.lane.b32.xlu0 %v453, 64
    %v456 = vpop.permute.xlu0 %455
    %v458 = vmul.f32 %v440, %v456
    %v459 = vld [vmem:[#allocation2 + $0x20] sm:$0xff]
    %v460 = vpack.c.bf16 %v458, %v458
    %462 = vrot.lane.b32.xlu0 %v460, 32
    %v463 = vpop.permute.xlu0 %462
    %v465 = vsel %vm171, %v463, 0
    %467 = vmatprep.subr.bf16.mxu0 0
    %468 = vmatpush1.bf16.msra.mxu0 %v167
    %469 = vmatprep.subr.bf16.mxu0 0
    %470 = vmatpush1.bf16.msra.mxu0 %v168
    %471 = vmatprep.subr.bf16.mxu0 0
    %472 = vmatpush1.bf16.msra.mxu0 0
    %473 = vmatprep.subr.bf16.mxu0 0
    %474 = vmatpush1.bf16.msra.mxu0 0
    %475 = vmatprep.subr.bf16.mxu0 0
    %476 = vmatpush1.bf16.msra.mxu0 0
    %477 = vmatprep.subr.bf16.mxu0 0
    %478 = vmatpush1.bf16.msra.mxu0 0
    %479 = vmatprep.subr.bf16.mxu0 0
    %480 = vmatpush1.bf16.msra.mxu0 0
    %481 = vmatprep.subr.bf16.mxu0 0
    %482 = vmatpush1.bf16.msra.mxu0 0
    %483 = vmatprep.subr.bf16.mxu0 0
    %484 = vmatpush1.bf16.msra.mxu0 0
    %485 = vmatprep.subr.bf16.mxu0 0
    %486 = vmatpush1.bf16.msra.mxu0 0
    %487 = vmatprep.subr.bf16.mxu0 0
    %488 = vmatpush1.bf16.msra.mxu0 0
    %489 = vmatprep.subr.bf16.mxu0 0
    %490 = vmatpush1.bf16.msra.mxu0 0
    %491 = vmatprep.subr.bf16.mxu0 0
    %492 = vmatpush1.bf16.msra.mxu0 0
    %493 = vmatprep.subr.bf16.mxu0 0
    %494 = vmatpush1.bf16.msra.mxu0 0
    %495 = vmatprep.subr.bf16.mxu0 0
    %496 = vmatpush1.bf16.msra.mxu0 0
    %497 = vmatprep.subr.bf16.mxu0 0
    %498 = vmatpush1.bf16.msra.mxu0 0
    %499 = vmatprep.mubr.bf16.mxu0 0
    %500 = vmatmul.mubr.bf16.gmra.mrb[0].mxu0 %v465
    %v501 = vpop.f32.mrb[0].mxu0
    %v502 = vadd.f32 0.0, %v501
    %v503 = vpop.f32.mrb[0].mxu0
    %v504 = vpop.f32.mrb[0].mxu0
    %v505 = vpop.f32.mrb[0].mxu0
    %506 = vdwg.mxu0
    %v507 = vadd.f32 %v459, %v502
    %v508 = vxor.u32 %v507, 2147483648
    %v509 = vmul.f32 %v508, 1.442695
    %v510 = vpow.pop %v509
    %v511 = vadd.f32 %v510, 1.0
    %v512 = vrcp.pop %v511
    %v513 = vmul.f32 1.0, %v512
    %v514 = vtanh.pop %v507
    %v515 = vmul.f32 %v513, %v452
    %517 = vrot.lane.b32.xlu0 %v514, 64
    %v518 = vpop.permute.xlu0 %517
    %v520 = vmul.f32 %v513, %v518
    %522 = vrot.lane.b32.xlu0 %v520, 32
    %v523 = vpop.permute.xlu0 %522
    %v525 = vadd.f32 %v515, %v523
    %v526 = vtanh.pop %v525
    %528 = vrot.lane.b32.xlu0 %v526, 64
    %v529 = vpop.permute.xlu0 %528
    %v531 = vmul.f32 %v513, %v529
    %v532 = vld [vmem:[#allocation2 + $0x28] sm:$0xff]
    %v533 = vpack.c.bf16 %v531, %v531
    %535 = vrot.lane.b32.xlu0 %v533, 32
    %v536 = vpop.permute.xlu0 %535
    %v538 = vsel %vm171, %v536, 0
    %540 = vmatprep.subr.bf16.mxu0 0
    %541 = vmatpush1.bf16.msra.mxu0 %v167
    %542 = vmatprep.subr.bf16.mxu0 0
    %543 = vmatpush1.bf16.msra.mxu0 %v168
    %544 = vmatprep.subr.bf16.mxu0 0
    %545 = vmatpush1.bf16.msra.mxu0 0
    %546 = vmatprep.subr.bf16.mxu0 0
    %547 = vmatpush1.bf16.msra.mxu0 0
    %548 = vmatprep.subr.bf16.mxu0 0
    %549 = vmatpush1.bf16.msra.mxu0 0
    %550 = vmatprep.subr.bf16.mxu0 0
    %551 = vmatpush1.bf16.msra.mxu0 0
    %552 = vmatprep.subr.bf16.mxu0 0
    %553 = vmatpush1.bf16.msra.mxu0 0
    %554 = vmatprep.subr.bf16.mxu0 0
    %555 = vmatpush1.bf16.msra.mxu0 0
    %556 = vmatprep.subr.bf16.mxu0 0
    %557 = vmatpush1.bf16.msra.mxu0 0
    %558 = vmatprep.subr.bf16.mxu0 0
    %559 = vmatpush1.bf16.msra.mxu0 0
    %560 = vmatprep.subr.bf16.mxu0 0
    %561 = vmatpush1.bf16.msra.mxu0 0
    %562 = vmatprep.subr.bf16.mxu0 0
    %563 = vmatpush1.bf16.msra.mxu0 0
    %564 = vmatprep.subr.bf16.mxu0 0
    %565 = vmatpush1.bf16.msra.mxu0 0
    %566 = vmatprep.subr.bf16.mxu0 0
    %567 = vmatpush1.bf16.msra.mxu0 0
    %568 = vmatprep.subr.bf16.mxu0 0
    %569 = vmatpush1.bf16.msra.mxu0 0
    %570 = vmatprep.subr.bf16.mxu0 0
    %571 = vmatpush1.bf16.msra.mxu0 0
    %572 = vmatprep.mubr.bf16.mxu0 0
    %573 = vmatmul.mubr.bf16.gmra.mrb[0].mxu0 %v538
    %v574 = vpop.f32.mrb[0].mxu0
    %v575 = vadd.f32 0.0, %v574
    %v576 = vpop.f32.mrb[0].mxu0
    %v577 = vpop.f32.mrb[0].mxu0
    %v578 = vpop.f32.mrb[0].mxu0
    %579 = vdwg.mxu0
    %v580 = vadd.f32 %v532, %v575
    %v581 = vxor.u32 %v580, 2147483648
    %v582 = vmul.f32 %v581, 1.442695
    %v583 = vpow.pop %v582
    %v584 = vadd.f32 %v583, 1.0
    %v585 = vrcp.pop %v584
    %v586 = vmul.f32 1.0, %v585
    %v587 = vtanh.pop %v580
    %v588 = vmul.f32 %v586, %v525
    %590 = vrot.lane.b32.xlu0 %v587, 64
    %v591 = vpop.permute.xlu0 %590
    %v593 = vmul.f32 %v586, %v591
    %595 = vrot.lane.b32.xlu0 %v593, 32
    %v596 = vpop.permute.xlu0 %595
    %v598 = vadd.f32 %v588, %v596
    %v599 = vtanh.pop %v598
    %601 = vrot.lane.b32.xlu0 %v599, 64
    %v602 = vpop.permute.xlu0 %601
    %v604 = vmul.f32 %v586, %v602
    %v605 = vld [vmem:[#allocation2 + $0x30] sm:$0xff]
    %v606 = vpack.c.bf16 %v604, %v604
    %608 = vrot.lane.b32.xlu0 %v606, 32
    %v609 = vpop.permute.xlu0 %608
    %v611 = vsel %vm171, %v609, 0
    %613 = vmatprep.subr.bf16.mxu0 0
    %614 = vmatpush1.bf16.msra.mxu0 %v167
    %615 = vmatprep.subr.bf16.mxu0 0
    %616 = vmatpush1.bf16.msra.mxu0 %v168
    %617 = vmatprep.subr.bf16.mxu0 0
    %618 = vmatpush1.bf16.msra.mxu0 0
    %619 = vmatprep.subr.bf16.mxu0 0
    %620 = vmatpush1.bf16.msra.mxu0 0
    %621 = vmatprep.subr.bf16.mxu0 0
    %622 = vmatpush1.bf16.msra.mxu0 0
    %623 = vmatprep.subr.bf16.mxu0 0
    %624 = vmatpush1.bf16.msra.mxu0 0
    %625 = vmatprep.subr.bf16.mxu0 0
    %626 = vmatpush1.bf16.msra.mxu0 0
    %627 = vmatprep.subr.bf16.mxu0 0
    %628 = vmatpush1.bf16.msra.mxu0 0
    %629 = vmatprep.subr.bf16.mxu0 0
    %630 = vmatpush1.bf16.msra.mxu0 0
    %631 = vmatprep.subr.bf16.mxu0 0
    %632 = vmatpush1.bf16.msra.mxu0 0
    %633 = vmatprep.subr.bf16.mxu0 0
    %634 = vmatpush1.bf16.msra.mxu0 0
    %635 = vmatprep.subr.bf16.mxu0 0
    %636 = vmatpush1.bf16.msra.mxu0 0
    %637 = vmatprep.subr.bf16.mxu0 0
    %638 = vmatpush1.bf16.msra.mxu0 0
    %639 = vmatprep.subr.bf16.mxu0 0
    %640 = vmatpush1.bf16.msra.mxu0 0
    %641 = vmatprep.subr.bf16.mxu0 0
    %642 = vmatpush1.bf16.msra.mxu0 0
    %643 = vmatprep.subr.bf16.mxu0 0
    %644 = vmatpush1.bf16.msra.mxu0 0
    %645 = vmatprep.mubr.bf16.mxu0 0
    %646 = vmatmul.mubr.bf16.gmra.mrb[0].mxu0 %v611
    %v647 = vpop.f32.mrb[0].mxu0
    %v648 = vadd.f32 0.0, %v647
    %v649 = vpop.f32.mrb[0].mxu0
    %v650 = vpop.f32.mrb[0].mxu0
    %v651 = vpop.f32.mrb[0].mxu0
    %652 = vdwg.mxu0
    %v653 = vadd.f32 %v605, %v648
    %v654 = vxor.u32 %v653, 2147483648
    %v655 = vmul.f32 %v654, 1.442695
    %v656 = vpow.pop %v655
    %v657 = vadd.f32 %v656, 1.0
    %v658 = vrcp.pop %v657
    %v659 = vmul.f32 1.0, %v658
    %v660 = vtanh.pop %v653
    %v661 = vmul.f32 %v659, %v598
    %663 = vrot.lane.b32.xlu0 %v660, 64
    %v664 = vpop.permute.xlu0 %663
    %v666 = vmul.f32 %v659, %v664
    %668 = vrot.lane.b32.xlu0 %v666, 32
    %v669 = vpop.permute.xlu0 %668
    %v671 = vadd.f32 %v661, %v669
    %v672 = vtanh.pop %v671
    %674 = vrot.lane.b32.xlu0 %v672, 64
    %v675 = vpop.permute.xlu0 %674
    %v677 = vmul.f32 %v659, %v675
    %v678 = vld [vmem:[#allocation2 + $0x38] sm:$0xff]
    %v679 = vpack.c.bf16 %v677, %v677
    %681 = vrot.lane.b32.xlu0 %v679, 32
    %v682 = vpop.permute.xlu0 %681
    %v684 = vsel %vm171, %v682, 0
    %686 = vmatprep.subr.bf16.mxu0 0
    %687 = vmatpush1.bf16.msra.mxu0 %v167
    %688 = vmatprep.subr.bf16.mxu0 0
    %689 = vmatpush1.bf16.msra.mxu0 %v168
    %690 = vmatprep.subr.bf16.mxu0 0
    %691 = vmatpush1.bf16.msra.mxu0 0
    %692 = vmatprep.subr.bf16.mxu0 0
    %693 = vmatpush1.bf16.msra.mxu0 0
    %694 = vmatprep.subr.bf16.mxu0 0
    %695 = vmatpush1.bf16.msra.mxu0 0
    %696 = vmatprep.subr.bf16.mxu0 0
    %697 = vmatpush1.bf16.msra.mxu0 0
    %698 = vmatprep.subr.bf16.mxu0 0
    %699 = vmatpush1.bf16.msra.mxu0 0
    %700 = vmatprep.subr.bf16.mxu0 0
    %701 = vmatpush1.bf16.msra.mxu0 0
    %702 = vmatprep.subr.bf16.mxu0 0
    %703 = vmatpush1.bf16.msra.mxu0 0
    %704 = vmatprep.subr.bf16.mxu0 0
    %705 = vmatpush1.bf16.msra.mxu0 0
    %706 = vmatprep.subr.bf16.mxu0 0
    %707 = vmatpush1.bf16.msra.mxu0 0
    %708 = vmatprep.subr.bf16.mxu0 0
    %709 = vmatpush1.bf16.msra.mxu0 0
    %710 = vmatprep.subr.bf16.mxu0 0
    %711 = vmatpush1.bf16.msra.mxu0 0
    %712 = vmatprep.subr.bf16.mxu0 0
    %713 = vmatpush1.bf16.msra.mxu0 0
    %714 = vmatprep.subr.bf16.mxu0 0
    %715 = vmatpush1.bf16.msra.mxu0 0
    %716 = vmatprep.subr.bf16.mxu0 0
    %717 = vmatpush1.bf16.msra.mxu0 0
    %718 = vmatprep.mubr.bf16.mxu0 0
    %719 = vmatmul.mubr.bf16.gmra.mrb[0].mxu0 %v684
    %v720 = vpop.f32.mrb[0].mxu0
    %v721 = vadd.f32 0.0, %v720
    %v722 = vpop.f32.mrb[0].mxu0
    %v723 = vpop.f32.mrb[0].mxu0
    %v724 = vpop.f32.mrb[0].mxu0
    %725 = vdwg.mxu0
    %v726 = vadd.f32 %v678, %v721
    %v727 = vxor.u32 %v726, 2147483648
    %v728 = vmul.f32 %v727, 1.442695
    %v729 = vpow.pop %v728
    %v730 = vadd.f32 %v729, 1.0
    %v731 = vrcp.pop %v730
    %v732 = vmul.f32 1.0, %v731
    %v733 = vtanh.pop %v726
    %v734 = vmul.f32 %v732, %v671
    %736 = vrot.lane.b32.xlu0 %v733, 64
    %v737 = vpop.permute.xlu0 %736
    %v739 = vmul.f32 %v732, %v737
    %741 = vrot.lane.b32.xlu0 %v739, 32
    %v742 = vpop.permute.xlu0 %741
    %v744 = vadd.f32 %v734, %v742
    %v745 = vtanh.pop %v744
    %747 = vrot.lane.b32.xlu0 %v745, 64
    %v748 = vpop.permute.xlu0 %747
    %v750 = vmul.f32 %v732, %v748
    %v751 = vpack.c.bf16 %v750, %v750
    %v752 = vld [vmem:[%s4] sm:$0xf]
    %v753 = vld [vmem:[%s4 + $0x4] sm:$0xf]
    %v754 = vld [vmem:[%s4 + $0x8] sm:$0xf]
    %v755 = vld [vmem:[%s4 + $0xc] sm:$0xf]
    %v756 = vld [vmem:[%s5] sm:$0x1]
    %v758 = vlaneseq
    %v759 = vshrl.u32 %v758, 7
    %v760 = vsub.s32 0, %v759
    %v761 = vrot.slane %v756, %v760
    %764 = vrot.lane.b32.xlu0 %v751, 32
    %v765 = vpop.permute.xlu0 %764
    %v770 = vunpack.c.l.b16 %v752
    %v771 = vunpack.c.l.b16 %v753
    %v772 = vunpack.c.l.b16 %v754
    %v773 = vunpack.c.l.b16 %v755
    %v774 = vpack.c.b16 %v771, %v770
    %v775 = vpack.c.b16 %v773, %v772
    %v779 = vsel %vm171, %v765, 0
    %781 = vmatprep.subr.bf16.mxu0 0
    %782 = vmatpush1.bf16.msra.mxu0 %v774
    %783 = vmatprep.subr.bf16.mxu0 0
    %784 = vmatpush1.bf16.msra.mxu0 %v775
    %785 = vmatprep.subr.bf16.mxu0 0
    %786 = vmatpush1.bf16.msra.mxu0 0
    %787 = vmatprep.subr.bf16.mxu0 0
    %788 = vmatpush1.bf16.msra.mxu0 0
    %789 = vmatprep.subr.bf16.mxu0 0
    %790 = vmatpush1.bf16.msra.mxu0 0
    %791 = vmatprep.subr.bf16.mxu0 0
    %792 = vmatpush1.bf16.msra.mxu0 0
    %793 = vmatprep.subr.bf16.mxu0 0
    %794 = vmatpush1.bf16.msra.mxu0 0
    %795 = vmatprep.subr.bf16.mxu0 0
    %796 = vmatpush1.bf16.msra.mxu0 0
    %797 = vmatprep.subr.bf16.mxu0 0
    %798 = vmatpush1.bf16.msra.mxu0 0
    %799 = vmatprep.subr.bf16.mxu0 0
    %800 = vmatpush1.bf16.msra.mxu0 0
    %801 = vmatprep.subr.bf16.mxu0 0
    %802 = vmatpush1.bf16.msra.mxu0 0
    %803 = vmatprep.subr.bf16.mxu0 0
    %804 = vmatpush1.bf16.msra.mxu0 0
    %805 = vmatprep.subr.bf16.mxu0 0
    %806 = vmatpush1.bf16.msra.mxu0 0
    %807 = vmatprep.subr.bf16.mxu0 0
    %808 = vmatpush1.bf16.msra.mxu0 0
    %809 = vmatprep.subr.bf16.mxu0 0
    %810 = vmatpush1.bf16.msra.mxu0 0
    %811 = vmatprep.subr.bf16.mxu0 0
    %812 = vmatpush1.bf16.msra.mxu0 0
    %813 = vmatprep.mubr.bf16.mxu0 0
    %814 = vmatmul.mubr.bf16.gmra.mrb[0].mxu0 %v779
    %v815 = vpop.f32.mrb[0].mxu0
    %v816 = vadd.f32 %v761, %v815
    %v817 = vpop.f32.mrb[0].mxu0
    %v818 = vpop.f32.mrb[0].mxu0
    %v819 = vpop.f32.mrb[0].mxu0
    %820 = vdwg.mxu0
    %821 = vmax.xlane.f32.xlu0 %v816
    %v822 = vpop.xlane.xlu0 %821
    %v823 = vsub.f32 %v816, %v822
    %v824 = vmul.f32 %v823, 1.442695
    %v825 = vpow.pop %v824
    %826 = vadd.xlane.f32.xlu0 %v825
    %v827 = vpop.xlane.xlu0 %826
    %v828 = vrcp.pop %v827
    %v829 = vmul.f32 %v825, %v828
    %830 = vst [vmem:[#allocation3] sm:$0xff] %v829
    // Predicated region
    $region26: #{tpu_custom_call.1} parent=1 // pred_check
      _
    $region27: #{tpu_custom_call.1} parent=1 // pred_check_branch
      %832 = sbr.rel (0) target = $region29
    $region28: #{tpu_custom_call.1} parent=1 // pred_region
      %s834 = ssub.s32 128, 128
      %835 = vsyncadd [#allocation4], %s834
      %s837 = sshll.u32 [#allocation3], 4
      %s838 = int_to_ptr.vmem [resolvable:$true] %s837
      %840 = dma.vmem_to_hbm [thread:$0]  %s838, 128, %s6, [#allocation4]
    $region29: #{tpu_custom_call.1} parent=1 // pred_fallthru
      _
    // Predicated region
    $region30: #{tpu_custom_call.1} parent=1 // pred_check
      _
    $region31: #{tpu_custom_call.1} parent=1 // pred_check_branch
      %842 = sbr.rel (0) target = $region33
    $region32: #{tpu_custom_call.1} parent=1 // pred_region
      %843 = dma.done [#allocation4], 128
    $region33: #{tpu_custom_call.1} parent=1 // pred_fallthru
      _
    %844 = vsyncpa [#allocation4], 1

</llo_original>
